<compile_context>
chip_gen: v7x
topology: tpu7x:2x2x1
jax: 0.10.0
libtpu: 0.0.40
codegen_flags: <defaults>
</compile_context>

<pallas_src>
import functools

import jax
import jax.numpy as jnp
from jax import lax
from jax.experimental import pallas as pl
from jax.experimental.pallas import tpu as pltpu


def _round_up(x, m):
    return (x + m - 1) // m * m


def _vmem_limit(est_bytes):
    # Generous headroom over the estimate, never below the 32 MiB scoped
    # default, capped at 64 MiB so we stay within v7x's physical VMEM.
    return int(min(64 * 1024 * 1024,
                   max(32 * 1024 * 1024, 2 * est_bytes + (4 << 20))))


# ---------------------------------------------------------------------------
# Path A: VMEM-resident table, one-hot x table MXU gather (small vocab / D).
# ---------------------------------------------------------------------------
def _onehot_gather_kernel(tok_ref, table_ref, out_ref):
    """tok_ref (tile,1) i32 VMEM; table_ref (V,D) VMEM; out_ref (tile,D)."""
    tile = out_ref.shape[0]
    v = table_ref.shape[0]
    tok = tok_ref[...]                                         # (tile, 1)
    col = lax.broadcasted_iota(jnp.int32, (tile, v), 1)        # (tile, V)
    one_hot = (tok == col).astype(table_ref.dtype)             # (tile, V)
    out_ref[...] = jnp.dot(
        one_hot, table_ref[...],
        preferred_element_type=jnp.float32).astype(out_ref.dtype)


# ---------------------------------------------------------------------------
# Path B: HBM table, per-row DMA gather straight into the output block.
# ---------------------------------------------------------------------------
def _dma_gather_kernel(tok_ref, wte_hbm, out_ref, sems, *,
                       s_pad, t_axis, b_axis, max_inflight):
    """tok_ref SMEM (B*S_pad,) i32 (scalar prefetch); wte_hbm HBM (V,D);
    out_ref VMEM (tile,D); sems DMA semaphores (max_inflight,)."""
    t = pl.program_id(t_axis)
    b = pl.program_id(b_axis)
    tile = out_ref.shape[0]
    base = b * s_pad + t * tile

    inflight = [None] * max_inflight
    for j in range(tile):                       # static unroll
        slot = j % max_inflight
        # Scalar token read *before* the semaphore wait, so scalar address
        # math is not serialized behind DMA waits.
        tid = tok_ref[base + j]
        if inflight[slot] is not None:
            inflight[slot].wait()
        cp = pltpu.make_async_copy(wte_hbm.at[tid], out_ref.at[j],
                                   sems.at[slot])
        cp.start()
        inflight[slot] = cp
    # Every row DMA targeting out_ref must complete inside this grid step:
    # the automatic output write-back starts as soon as the body returns.
    for cp in inflight:
        if cp is not None:
            cp.wait()


# ---------------------------------------------------------------------------
# Wrapper
# ---------------------------------------------------------------------------
def soft_embedding_forward(tokens, wte_weight, learned_embedding, *,
                           tile_rows=256, gather="auto", max_inflight=16):
    """tokens (B,S) int; wte_weight (V,D) float; learned_embedding (n_tok,D)."""
    B, S = tokens.shape
    V, D = wte_weight.shape
    n_tok, d2 = learned_embedding.shape
    assert d2 == D, "embedding dims must match"
    assert n_tok <= S, "n_tokens must not exceed sequence length"
    dtype = wte_weight.dtype

    prefix = jnp.broadcast_to(learned_embedding[None].astype(dtype),
                              (B, n_tok, D))
    suffix_len = S - n_tok
    if suffix_len == 0:
        return prefix

    # Clamp ids so a bad token can never become an OOB HBM DMA / gather.
    suf_tok = jnp.clip(tokens[:, n_tok:].astype(jnp.int32), 0, V - 1)

    # Tile geometry: large tiles (amortize per-step overhead), sublane aligned,
    # never larger than the padded suffix itself.
    tile = min(int(tile_rows), _round_up(suffix_len, 8))
    tile = max(8, _round_up(tile, 8))
    s_pad = _round_up(suffix_len, tile)
    if s_pad != suffix_len:
        suf_tok = jnp.pad(suf_tok, ((0, 0), (0, s_pad - suffix_len)))
    n_tiles = s_pad // tile

    # Grid: both axes independent ("parallel"); put the larger axis first so
    # v7x megacore sharding splits the bigger axis across its 2 TensorCores.
    swap = B > n_tiles
    grid = (B, n_tiles) if swap else (n_tiles, B)
    t_axis, b_axis = (1, 0) if swap else (0, 1)

    def _tb(i0, i1):
        return (i1, i0) if swap else (i0, i1)      # -> (tile_idx, batch_idx)

    itemsize = jnp.dtype(dtype).itemsize
    table_bytes = V * D * itemsize
    out_block_bytes = tile * D * itemsize

    if gather == "auto":
        use_onehot = table_bytes <= 4 * 1024 * 1024 and V <= 4096
    else:
        use_onehot = (gather == "onehot")

    out_shape = jax.ShapeDtypeStruct((B, s_pad, D), dtype)

    if use_onehot:
        vmem_est = 2 * table_bytes + 2 * out_block_bytes + tile * (V + 2) * 4

        def tok_map(i0, i1):
            t, b = _tb(i0, i1)
            return (b, t, 0)

        def tab_map(i0, i1):
            return (0, 0)

        def out_map(i0, i1):
            t, b = _tb(i0, i1)
            return (b, t, 0)

        suffix = pl.pallas_call(
            _onehot_gather_kernel,
            out_shape=out_shape,
            grid=grid,
            in_specs=[
                pl.BlockSpec((None, tile, 1), tok_map),   # token ids
                pl.BlockSpec((V, D), tab_map),            # table, VMEM resident
            ],
            out_specs=pl.BlockSpec((None, tile, D), out_map),
            compiler_params=pltpu.CompilerParams(
                dimension_semantics=("parallel", "parallel"),
                vmem_limit_bytes=_vmem_limit(vmem_est),
            ),
        )(suf_tok[..., None], wte_weight)
    else:
        # Flat token ids are scalar-prefetched into SMEM (pads to next pow2).
        smem_bytes = 1 << max(1, (4 * B * s_pad - 1).bit_length())
        assert smem_bytes <= 512 * 1024, (
            "token table too large for scalar-prefetch SMEM at this B*S")
        # TODO(synk): for production B*S, feed tokens as an SMEM-tiled
        # BlockSpec input (per-(b, t) slice) instead of one big scalar prefetch.
        n_flight = max(1, min(int(max_inflight), tile))
        kernel = functools.partial(
            _dma_gather_kernel, s_pad=s_pad, t_axis=t_axis, b_axis=b_axis,
            max_inflight=n_flight)
        vmem_est = 2 * out_block_bytes

        def out_map(i0, i1, tok):
            t, b = _tb(i0, i1)
            return (b, t, 0)

        suffix = pl.pallas_call(
            kernel,
            out_shape=out_shape,
            grid_spec=pltpu.PrefetchScalarGridSpec(
                num_scalar_prefetch=1,
                grid=grid,
                in_specs=[pl.BlockSpec(memory_space=pl.ANY)],  # table in HBM
                out_specs=pl.BlockSpec((None, tile, D), out_map),
                scratch_shapes=[pltpu.SemaphoreType.DMA((n_flight,))],
            ),
            compiler_params=pltpu.CompilerParams(
                dimension_semantics=("parallel", "parallel"),
                vmem_limit_bytes=_vmem_limit(vmem_est),
            ),
        )(suf_tok.reshape(-1), wte_weight)

    return jnp.concatenate([prefix, suffix[:, :suffix_len]], axis=1)


if __name__ == "__main__":
    # Small deterministic setup consistent with the module (n_tokens=10 is the
    # PyTorch default; exercises prefix + suffix handling).
    B, S = 2, 32          # batch, full token sequence length
    V, D = 64, 128        # vocab size, hidden size
    N_TOKENS = 10         # number of soft-prompt tokens

    key = jax.random.PRNGKey(0)
    k_wte, k_tok = jax.random.split(key)

    # nn.Embedding weight (deterministic init).
    wte_weight = jax.random.normal(k_wte, (V, D), dtype=jnp.float32) * 0.02
    # initialize_from_vocab=True -> learned_embedding = wte.weight[:n_tokens]
    learned_embedding = wte_weight[:N_TOKENS]
    tokens = jax.random.randint(k_tok, (B, S), 0, V, dtype=jnp.int32)

    # Pure-JAX reference.
    ref = jnp.concatenate(
        [jnp.broadcast_to(learned_embedding[None], (B, N_TOKENS, D)),
         wte_weight[tokens[:, N_TOKENS:]]],
        axis=1)

    # Auto path: small table -> VMEM-resident one-hot MXU gather.
    out = jax.block_until_ready(
        soft_embedding_forward(tokens, wte_weight, learned_embedding))
    assert out.shape == (B, S, D), out.shape
    assert jnp.allclose(out, ref), "onehot path mismatch vs reference"

    # Forced HBM-DMA gather path (what large vocabularies use); exercise both
    # grid orderings (batch-major and tile-major).
    out_dma = jax.block_until_ready(
        soft_embedding_forward(tokens, wte_weight, learned_embedding,
                               gather="dma", tile_rows=256))
    assert jnp.allclose(out_dma, ref), "dma path mismatch vs reference"

    out_dma_small = jax.block_until_ready(
        soft_embedding_forward(tokens, wte_weight, learned_embedding,
                               gather="dma", tile_rows=8))
    assert jnp.allclose(out_dma_small, ref), "dma path (small tile) mismatch"

    print("KERNEL_OK")
</pallas_src>

<mosaic_0001>
module attributes {stable_mosaic.version = 11 : i64} {
  func.func @_onehot_gather_kernel(%arg0: i32, %arg1: i32, %arg2: memref<1x24x1xi32, #tpu.memory_space<vmem>>, %arg3: memref<64x128xf32, #tpu.memory_space<vmem>>, %arg4: memref<1x24x128xf32, #tpu.memory_space<vmem>>) attributes {dimension_semantics = [#tpu.dimension_semantics<parallel>, #tpu.dimension_semantics<parallel>], iteration_bounds = array<i64: 2, 1>, scalar_prefetch = 0 : i64, scratch_operands = 0 : i64, tpu.core_type = #tpu.core_type<tc>, window_params = [{transform_indices = @transform_0, window_bounds = array<i64: 1, 24, 1>}, {pipeline_mode = #tpu.pipeline_mode<synchronous>, transform_indices = @transform_1, window_bounds = array<i64: 64, 128>}, {transform_indices = @transform_2, window_bounds = array<i64: 1, 24, 128>}]} {
    %c0 = arith.constant 0 : index
    %c0_0 = arith.constant 0 : index
    %c0_1 = arith.constant 0 : index
    %0 = vector.load %arg2[%c0, %c0_0, %c0_1] : memref<1x24x1xi32, #tpu.memory_space<vmem>>, vector<1x24x1xi32>
    %1 = vector.shape_cast %0 : vector<1x24x1xi32> to vector<24x1xi32>
    %2 = tpu.iota {dimensions = array<i32: 1>} : vector<24x64xi32>
    %3 = vector.broadcast %1 : vector<24x1xi32> to vector<24x64xi32>
    %4 = arith.cmpi eq, %3, %2 : vector<24x64xi32>
    %5 = arith.extui %4 : vector<24x64xi1> to vector<24x64xi32>
    %6 = arith.sitofp %5 : vector<24x64xi32> to vector<24x64xf32>
    %c0_2 = arith.constant 0 : index
    %c0_3 = arith.constant 0 : index
    %7 = vector.load %arg3[%c0_2, %c0_3] : memref<64x128xf32, #tpu.memory_space<vmem>>, vector<64x128xf32>
    %cst = arith.constant dense<0.000000e+00> : vector<24x128xf32>
    %8 = tpu.matmul %6, %7, %cst {dimension_numbers = #tpu.dot_dimension_numbers<[1], [0], [0], [1], [0, 0, 1, 1], [], []>} : vector<24x64xf32>, vector<64x128xf32>, vector<24x128xf32> -> vector<24x128xf32>
    %c0_4 = arith.constant 0 : index
    %c0_5 = arith.constant 0 : index
    %c0_6 = arith.constant 0 : index
    %9 = vector.load %arg4[%c0_4, %c0_5, %c0_6] : memref<1x24x128xf32, #tpu.memory_space<vmem>>, vector<1x24x128xf32>
    %10 = vector.shape_cast %9 : vector<1x24x128xf32> to vector<24x128xf32>
    %11 = vector.shape_cast %8 : vector<24x128xf32> to vector<1x24x128xf32>
    tpu.vector_store %arg4[%c0_4, %c0_5, %c0_6], %11 {strides = array<i32>} : memref<1x24x128xf32, #tpu.memory_space<vmem>>, vector<1x24x128xf32>,
    return
  }
  func.func @transform_0(%arg0: i32, %arg1: i32) -> (i32, i32, i32) {
    %c0_i32 = arith.constant 0 : i32
    %c0_i32_0 = arith.constant 0 : i32
    return %arg0, %arg1, %c0_i32 : i32, i32, i32
  }
  func.func @transform_1(%arg0: i32, %arg1: i32) -> (i32, i32) {
    %c0_i32 = arith.constant 0 : i32
    %c0_i32_0 = arith.constant 0 : i32
    %c0_i32_1 = arith.constant 0 : i32
    return %c0_i32, %c0_i32_0 : i32, i32
  }
  func.func @transform_2(%arg0: i32, %arg1: i32) -> (i32, i32, i32) {
    %c0_i32 = arith.constant 0 : i32
    %c0_i32_0 = arith.constant 0 : i32
    return %arg0, %arg1, %c0_i32 : i32, i32, i32
  }
}

</mosaic_0001>

<llo_original>
// kernel: tpu_custom_call.1
$region0: #{tpu_custom_call.1}
  #allocation0 [shape = 'u32[]', space=smem, size = 0x4, offset = 0x4, fixed_abs, tag = 'smem constant byte address 0x4 - core index']
  #allocation1 [shape = 'u32[144,128]{1,0:T(1,128)}', space=vmem, size = 0x12000, scoped, tag = 'internal scratch']
  %s0 = inlined_call_operand.vmem [shape: s32[2,24,1], index: 0, kind: input, shape index: {}]
  %s1 = inlined_call_operand.hbm [shape: f32[64,128], index: 1, kind: input, shape index: {}]
  %s2 = inlined_call_operand.hbm [shape: f32[2,24,128], index: 2, kind: output, shape index: {}]
  %s3 = sld [smem:[#allocation0]]
  $region45: #{tpu_custom_call.1} parent=0
    _
  %s5 = ssub.s32 1, %s3
  %s6 = scalar_select 0, %s5, %s3
  $region1: #{tpu_custom_call.1} parent=0
    #allocation2 [shape = 'u8[32768]{0}', space=vmem, size = 0x8000, scoped, tag = 'input window, operand 1, single buffered']
    #allocation3 [shape = 's32[2]{0}', space=sflag, size = 0x8, scoped, tag = 'scoped memory for tpu_custom_call.1']
    #allocation4 [shape = 's32[2]{0}', space=sflag, size = 0x8, scoped, tag = 'scoped memory for tpu_custom_call.1']
    #allocation5 [shape = 'u8[24576]{0}', space=vmem, size = 0x6000, scoped, tag = 'output window, operand 0']
    %7 = vsyncpa [#allocation3], 0
    %8 = vsyncpa [#allocation4], 0
    %s9 = scalar_lea.sflag [#allocation4], 1
    %10 = vsyncpa %s9, 0
    loop: start=0, step=1, limit=4
    $region2: #{tpu_custom_call.1} parent=1 // loop_pre_header
      _
    $region3: #{tpu_custom_call.1} parent=1 // loop_header
      %s12 = sphi 0, %s16
      %p13 = scmp.ge.s32.totalorder %s12, 4
      %s19 = sphi 0, %s31
      %s20 = sphi 0, %s27
      %s21 = sphi 0, %s19
      %s22 = sphi 0, %s20
      %s23 = sphi 0, %s21
      %s24 = sphi 0, %s22
      %s36 = sphi 0, %s38
      %s39 = sphi 0, %s36
      %s40 = sphi 0, %s39
      %s56 = sphi 0, %s40
      %s60 = sphi 0, %s60
      %s62 = sphi 0, %s60
      %s63 = sphi 0, %s62
      %s77 = sphi 0, %s63
      %s85 = sphi 0, %s87
      %s88 = sphi 0, %s85
      %s89 = sphi 0, %s88
      %s105 = sphi 0, %s89
    $region4: #{tpu_custom_call.1} parent=1 // loop_header_branch
      %15 = sbr.rel (%p13) target = $region8
    $region5: #{tpu_custom_call.1} parent=1 // loop_body
      %s17 = ssub.s32 %s12, 1
      %s18 = ssub.s32 %s12, 2
      %s25 = sadd.s32 1, %s20
      %p26 = scmp.ge.s32.totalorder %s25, 1
      %s27 = scalar_select %p26, 0, %s25
      %s28 = sadd.s32 1, %s19
      %s29 = scalar_select %p26, %s28, %s19
      %p30 = scmp.ge.s32.totalorder %s29, 2
      %s31 = scalar_select %p30, 0, %s29
      %s32 = ssub.s32 %s19, %s31
      %s33 = ssub.s32 %s20, %s27
      %s34 = sor.u32 %s32, %s33
      %p35 = scmp.eq.s32.totalorder %s34, 0
      %s37 = sadd.s32 %s36, 1
      %s38 = scalar_select %p35, %s36, %s37
      %p41 = pneg %p35
      %p42 = scmp.eq.s32.totalorder %s12, 1
      %p43 = por %p41, %p42
      %p44 = scmp.ne.s32.totalorder %s36, %s39
      %p45 = scmp.eq.s32.totalorder %s12, 0
      %p46 = por %p44, %p45
      %p47 = scmp.ne.s32.totalorder %s36, %s39
      %p48 = scmp.eq.s32.totalorder %s17, 1
      %p49 = por %p47, %p48
      %p50 = scmp.ne.s32.totalorder %s39, %s40
      %p51 = scmp.eq.s32.totalorder %s17, 0
      %p52 = por %p50, %p51
      %p53 = scmp.ne.s32.totalorder %s39, %s40
      %p54 = scmp.eq.s32.totalorder %s18, 1
      %p55 = por %p53, %p54
      %p57 = scmp.ne.s32.totalorder %s40, %s56
      %p58 = scmp.eq.s32.totalorder %s18, 0
      %p59 = por %p57, %p58
      %s61 = sadd.s32 %s60, 1
      %p64 = scmp.eq.s32.totalorder %s12, 1
      %p65 = scmp.ne.s32.totalorder %s60, %s62
      %p66 = scmp.eq.s32.totalorder %s12, 0
      %p67 = por %p65, %p66
      %p68 = scmp.ne.s32.totalorder %s60, %s62
      %p69 = scmp.eq.s32.totalorder %s17, 1
      %p70 = por %p68, %p69
      %p71 = scmp.ne.s32.totalorder %s62, %s63
      %p72 = scmp.eq.s32.totalorder %s17, 0
      %p73 = por %p71, %p72
      %p74 = scmp.ne.s32.totalorder %s62, %s63
      %p75 = scmp.eq.s32.totalorder %s18, 1
      %p76 = por %p74, %p75
      %p78 = scmp.ne.s32.totalorder %s63, %s77
      %p79 = scmp.eq.s32.totalorder %s18, 0
      %p80 = por %p78, %p79
      %s81 = ssub.s32 %s19, %s31
      %s82 = ssub.s32 %s20, %s27
      %s83 = sor.u32 %s81, %s82
      %p84 = scmp.eq.s32.totalorder %s83, 0
      %s86 = sadd.s32 %s85, 1
      %s87 = scalar_select %p84, %s85, %s86
      %p90 = pneg %p84
      %p91 = scmp.eq.s32.totalorder %s12, 1
      %p92 = por %p90, %p91
      %p93 = scmp.ne.s32.totalorder %s85, %s88
      %p94 = scmp.eq.s32.totalorder %s12, 0
      %p95 = por %p93, %p94
      %p96 = scmp.ne.s32.totalorder %s85, %s88
      %p97 = scmp.eq.s32.totalorder %s17, 1
      %p98 = por %p96, %p97
      %p99 = scmp.ne.s32.totalorder %s88, %s89
      %p100 = scmp.eq.s32.totalorder %s17, 0
      %p101 = por %p99, %p100
      %p102 = scmp.ne.s32.totalorder %s88, %s89
      %p103 = scmp.eq.s32.totalorder %s18, 1
      %p104 = por %p102, %p103
      %p106 = scmp.ne.s32.totalorder %s89, %s105
      %p107 = scmp.eq.s32.totalorder %s18, 0
      %p108 = por %p106, %p107
      %p109 = scmp.le.s32.totalorder 1, %s12
      %p110 = scmp.lt.s32.totalorder %s12, 3
      %p111 = pnand %p109, %p110
      %p112 = pneg %p111
      // Predicated region
      $region9: #{tpu_custom_call.1} parent=5 // pred_check
        _
      $region10: #{tpu_custom_call.1} parent=5 // pred_check_branch
        %114 = sbr.rel (%p111) target = $region12
      $region11: #{tpu_custom_call.1} parent=5 // pred_region
        %s115 = ssub.s32 %s12, 1
        // Predicated region
        $region13: #{tpu_custom_call.1} parent=11 // pred_check
          %p116 = pneg %p73
        $region14: #{tpu_custom_call.1} parent=11 // pred_check_branch
          %118 = sbr.rel (%p116) target = $region16
        $region15: #{tpu_custom_call.1} parent=11 // pred_region
          %s120 = ssub.s32 1024, 1024
          %121 = vsyncadd [#allocation3], %s120
          %s122 = sshll.u32 [#allocation2], 4
          %s123 = int_to_ptr.vmem [resolvable:$true] %s122
          %128 = dma.hbm_to_vmem [thread:$0]  %s1, 1024, %s123, [#allocation3], 128, 128, 8
        $region16: #{tpu_custom_call.1} parent=11 // pred_fallthru
          _
      $region12: #{tpu_custom_call.1} parent=5 // pred_fallthru
        _
      %p129 = scmp.lt.s32.totalorder %s12, 2
      // Predicated region
      $region17: #{tpu_custom_call.1} parent=5 // pred_check
        %p130 = pneg %p129
      $region18: #{tpu_custom_call.1} parent=5 // pred_check_branch
        %132 = sbr.rel (%p130) target = $region20
      $region19: #{tpu_custom_call.1} parent=5 // pred_region
        // Predicated region
        $region21: #{tpu_custom_call.1} parent=19 // pred_check
          %p133 = pneg %p46
        $region22: #{tpu_custom_call.1} parent=19 // pred_check_branch
          %135 = sbr.rel (%p133) target = $region24
        $region23: #{tpu_custom_call.1} parent=19 // pred_region
          %s136 = smul.u32 3, %s20
          %p137 = scmp.lt.s32.totalorder %s19, 1
          %s138 = scalar_select %p137, %s19, 1
          %p139 = scmp.lt.s32.totalorder %s136, 2
          %s140 = scalar_select %p139, %s136, 2
          %s141 = smul.addr %s138, 3
          %s142 = sadd.s32 %s140, %s141
          %s143 = smul.addr %s142, 8
          %s144 = scalar_lea.vmem %s0, %s143
          %s145 = smul.u32 3, %s20
        $region24: #{tpu_custom_call.1} parent=19 // pred_fallthru
          _
      $region20: #{tpu_custom_call.1} parent=5 // pred_fallthru
        _
      %p146 = scmp.le.s32.totalorder 1, %s12
      %p147 = scmp.lt.s32.totalorder %s12, 3
      %p148 = pnand %p146, %p147
      %p149 = pneg %p148
      // Predicated region
      $region25: #{tpu_custom_call.1} parent=5 // pred_check
        _
      $region26: #{tpu_custom_call.1} parent=5 // pred_check_branch
        %151 = sbr.rel (%p148) target = $region28
      $region27: #{tpu_custom_call.1} parent=5 // pred_region
        %s152 = ssub.s32 %s12, 1
        // Predicated region
        $region29: #{tpu_custom_call.1} parent=27 // pred_check
          %p153 = pneg %p73
        $region30: #{tpu_custom_call.1} parent=27 // pred_check_branch
          %155 = sbr.rel (%p153) target = $region32
        $region31: #{tpu_custom_call.1} parent=27 // pred_region
          %156 = dma.done [#allocation3], 1024
        $region32: #{tpu_custom_call.1} parent=27 // pred_fallthru
          _
        %s157 = smul.u32 3, %s22
        %p158 = scmp.lt.s32.totalorder %s21, 1
        %s159 = scalar_select %p158, %s21, 1
        %p160 = scmp.lt.s32.totalorder %s157, 2
        %s161 = scalar_select %p160, %s157, 2
        %s162 = smul.addr %s159, 3
        %s163 = sadd.s32 %s161, %s162
        %s164 = smul.addr %s163, 8
        %s165 = scalar_lea.vmem %s0, %s164
        %p166 = pneg %p52
        %p167 = pneg %p49
        %p168 = pneg %p73
        %p169 = pneg %p70
        %p170 = pneg %p101
        %p171 = pneg %p98
        %s172 = sand.u32 %s88, 1
        %s173 = scalar_lea.sflag [#allocation4], %s172
        %s174 = sand.u32 %s88, 1
        %s175 = smul.addr %s174, 24
        %s176 = scalar_lea.vmem [#allocation5], %s175
        %s177 = smul.u32 3, %s22
        %p178 = scmp.lt.s32.totalorder %s21, 1
        %s179 = scalar_select %p178, %s21, 1
        %p180 = scmp.lt.s32.totalorder %s177, 2
        %s181 = scalar_select %p180, %s177, 2
        %s182 = smul.addr %s179, 3
        %s183 = sadd.s32 %s181, %s182
        %s184 = smul.addr %s183, 8
        %s185 = scalar_lea.vmem %s0, %s184
        %s186 = smul.u32 3, %s22
        %s187 = smul.u32 3, %s22
        %v188 = vld [vmem:[%s185] sm:$0xff]
        %v189 = vld [vmem:[%s185 + $0x8] sm:$0xff]
        %v190 = vld [vmem:[%s185 + $0x10] sm:$0xff]
        %v191 = vlaneseq
        %v192 = vand.u32 %v191, 127
        %193 = vset.pattern.permute.xlu0 0
        %194 = vperm.xlu0 %193, %v188
        %v195 = vpop.permute.xlu0 %194
        %196 = vset.pattern.permute.xlu0 0
        %197 = vperm.xlu0 %196, %v189
        %v198 = vpop.permute.xlu0 %197
        %199 = vset.pattern.permute.xlu0 0
        %200 = vperm.xlu0 %199, %v190
        %v201 = vpop.permute.xlu0 %200
        %vm202 = vcmp.eq.s32.totalorder %v195, %v192
        %vm203 = vcmp.eq.s32.totalorder %v198, %v192
        %vm204 = vcmp.eq.s32.totalorder %v201, %v192
        %v205 = vsel %vm202, 1, 0
        %v206 = vsel %vm203, 1, 0
        %v207 = vsel %vm204, 1, 0
        %v208 = vcvt.s32.f32 %v205
        %v209 = vcvt.s32.f32 %v206
        %v210 = vcvt.s32.f32 %v207
        %v211 = vld [vmem:[#allocation2] sm:$0xff]
        %v212 = vld [vmem:[#allocation2 + $0x8] sm:$0xff]
        %v213 = vld [vmem:[#allocation2 + $0x10] sm:$0xff]
        %v214 = vld [vmem:[#allocation2 + $0x18] sm:$0xff]
        %v215 = vld [vmem:[#allocation2 + $0x20] sm:$0xff]
        %v216 = vld [vmem:[#allocation2 + $0x28] sm:$0xff]
        %v217 = vld [vmem:[#allocation2 + $0x30] sm:$0xff]
        %v218 = vld [vmem:[#allocation2 + $0x38] sm:$0xff]
        %vm219 = vcmask 523264
        %v221 = vsel %vm219, %v208, 0
        %v224 = vsel %vm219, %v209, 0
        %v227 = vsel %vm219, %v210, 0
        %229 = vmatprep.subr.mxu0 0.0
        %230 = vmatpush1.msra.mxu0 %v211
        %231 = vmatprep.subr.mxu0 0.0
        %232 = vmatpush1.msra.mxu0 %v212
        %233 = vmatprep.subr.mxu0 0.0
        %234 = vmatpush1.msra.mxu0 %v213
        %235 = vmatprep.subr.mxu0 0.0
        %236 = vmatpush1.msra.mxu0 %v214
        %237 = vmatprep.subr.mxu0 0.0
        %238 = vmatpush1.msra.mxu0 %v215
        %239 = vmatprep.subr.mxu0 0.0
        %240 = vmatpush1.msra.mxu0 %v216
        %241 = vmatprep.subr.mxu0 0.0
        %242 = vmatpush1.msra.mxu0 %v217
        %243 = vmatprep.subr.mxu0 0.0
        %244 = vmatpush1.msra.mxu0 %v218
        %245 = vmatprep.subr.mxu0 0.0
        %246 = vmatpush1.msra.mxu0 0.0
        %247 = vmatprep.subr.mxu0 0.0
        %248 = vmatpush1.msra.mxu0 0.0
        %249 = vmatprep.subr.mxu0 0.0
        %250 = vmatpush1.msra.mxu0 0.0
        %251 = vmatprep.subr.mxu0 0.0
        %252 = vmatpush1.msra.mxu0 0.0
        %253 = vmatprep.subr.mxu0 0.0
        %254 = vmatpush1.msra.mxu0 0.0
        %255 = vmatprep.subr.mxu0 0.0
        %256 = vmatpush1.msra.mxu0 0.0
        %257 = vmatprep.subr.mxu0 0.0
        %258 = vmatpush1.msra.mxu0 0.0
        %259 = vmatprep.subr.mxu0 0.0
        %260 = vmatpush1.msra.mxu0 0.0
        %261 = vmatprep.subr.mxu0 0.0
        %262 = vmatpush1.msra.mxu0 0.0
        %263 = vmatprep.subr.mxu0 0.0
        %264 = vmatpush1.msra.mxu0 0.0
        %265 = vmatprep.subr.mxu0 0.0
        %266 = vmatpush1.msra.mxu0 0.0
        %267 = vmatprep.subr.mxu0 0.0
        %268 = vmatpush1.msra.mxu0 0.0
        %269 = vmatprep.subr.mxu0 0.0
        %270 = vmatpush1.msra.mxu0 0.0
        %271 = vmatprep.subr.mxu0 0.0
        %272 = vmatpush1.msra.mxu0 0.0
        %273 = vmatprep.subr.mxu0 0.0
        %274 = vmatpush1.msra.mxu0 0.0
        %275 = vmatprep.subr.mxu0 0.0
        %276 = vmatpush1.msra.mxu0 0.0
        %277 = vmatprep.subr.mxu0 0.0
        %278 = vmatpush1.msra.mxu0 0.0
        %279 = vmatprep.subr.mxu0 0.0
        %280 = vmatpush1.msra.mxu0 0.0
        %281 = vmatprep.subr.mxu0 0.0
        %282 = vmatpush1.msra.mxu0 0.0
        %283 = vmatprep.subr.mxu0 0.0
        %284 = vmatpush1.msra.mxu0 0.0
        %285 = vmatprep.subr.mxu0 0.0
        %286 = vmatpush1.msra.mxu0 0.0
        %287 = vmatprep.subr.mxu0 0.0
        %288 = vmatpush1.msra.mxu0 0.0
        %289 = vmatprep.subr.mxu0 0.0
        %290 = vmatpush1.msra.mxu0 0.0
        %291 = vmatprep.subr.mxu0 0.0
        %292 = vmatpush1.msra.mxu0 0.0
        %293 = vmatprep.mubr.f32.mxu0 0.0
        %294 = vmatmul.mubr.f32.gmra.mrb[0].mxu0 %v221
        %v295 = vpop.f32.mrb[0].mxu0
        %v296 = vadd.f32 0.0, %v295
        %v297 = vpop.f32.mrb[0].mxu0
        %298 = vmatprep.mubr.f32.mxu0 0.0
        %299 = vmatmul.mubr.f32.gmra.mrb[0].mxu0 %v224
        %v300 = vpop.f32.mrb[0].mxu0
        %v301 = vadd.f32 0.0, %v300
        %v302 = vpop.f32.mrb[0].mxu0
        %303 = vmatprep.mubr.f32.mxu0 0.0
        %304 = vmatmul.mubr.f32.gmra.mrb[0].mxu0 %v227
        %v305 = vpop.f32.mrb[0].mxu0
        %v306 = vadd.f32 0.0, %v305
        %v307 = vpop.f32.mrb[0].mxu0
        %308 = vdwg.mxu0
        %309 = vst [vmem:[%s176] sm:$0xff] %v296
        %310 = vst [vmem:[%s176 + $0x8] sm:$0xff] %v301
        %311 = vst [vmem:[%s176 + $0x10] sm:$0xff] %v306
        %s312 = sand.u32 %s88, 1
        %s313 = scalar_lea.sflag [#allocation4], %s312
        %s314 = sand.u32 %s88, 1
        %s315 = smul.addr %s314, 24
        %s316 = scalar_lea.vmem [#allocation5], %s315
        // Predicated region
        $region33: #{tpu_custom_call.1} parent=27 // pred_check
          %p317 = pneg %p98
        $region34: #{tpu_custom_call.1} parent=27 // pred_check_branch
          %319 = sbr.rel (%p317) target = $region36
        $region35: #{tpu_custom_call.1} parent=27 // pred_region
          %s320 = smul.u32 3, %s22
          %s322 = ssub.s32 384, 384
          %323 = vsyncadd %s313, %s322
          %s324 = smul.addr %s21, 3
          %s325 = sadd.s32 %s320, %s324
          %s326 = smul.addr %s325, 128
          %s327 = scalar_lea.hbm %s2, %s326
          %s328 = sshll.u32 %s316, 4
          %s329 = int_to_ptr.vmem [resolvable:$true] %s328
          %334 = dma.vmem_to_hbm [thread:$0]  %s329, 384, %s327, %s313, 128, 128, 8
        $region36: #{tpu_custom_call.1} parent=27 // pred_fallthru
          _
      $region28: #{tpu_custom_call.1} parent=5 // pred_fallthru
        _
      %p335 = scmp.le.s32.totalorder 2, %s12
      // Predicated region
      $region37: #{tpu_custom_call.1} parent=5 // pred_check
        %p336 = pneg %p335
      $region38: #{tpu_custom_call.1} parent=5 // pred_check_branch
        %338 = sbr.rel (%p336) target = $region40
      $region39: #{tpu_custom_call.1} parent=5 // pred_region
        %s339 = ssub.s32 %s12, 2
        // Predicated region
        $region41: #{tpu_custom_call.1} parent=39 // pred_check
          %p340 = pneg %p104
        $region42: #{tpu_custom_call.1} parent=39 // pred_check_branch
          %342 = sbr.rel (%p340) target = $region44
        $region43: #{tpu_custom_call.1} parent=39 // pred_region
          %s343 = sand.u32 %s89, 1
          %s344 = scalar_lea.sflag [#allocation4], %s343
          %s345 = sand.u32 %s89, 1
          %s346 = smul.addr %s345, 24
          %s347 = scalar_lea.vmem [#allocation5], %s346
          %348 = dma.done %s344, 384
        $region44: #{tpu_custom_call.1} parent=39 // pred_fallthru
          _
      $region40: #{tpu_custom_call.1} parent=5 // pred_fallthru
        _
    $region6: #{tpu_custom_call.1} parent=1 // loop_footer
      %s16 = sadd.s32 1, %s12
    $region7: #{tpu_custom_call.1} parent=1 // loop_footer_branch
      %11 = sbr.rel target = $region3
    $region8: #{tpu_custom_call.1} parent=1 // loop_exit
      _
    %349 = vsyncpa [#allocation3], 1
    %s350 = scalar_lea.sflag [#allocation3], 1
    %351 = vsyncpa %s350, 1
    %352 = vsyncpa [#allocation4], 1
    %s353 = scalar_lea.sflag [#allocation4], 1
    %354 = vsyncpa %s353, 1

</llo_original>
